<compile_context>
chip_gen: v7x
topology: tpu7x:2x2x1
jax: 0.10.0
libtpu: 0.0.40
codegen_flags: <defaults>
</compile_context>

<pallas_src>
import functools

import jax
import jax.numpy as jnp
from jax.experimental import pallas as pl
from jax.experimental.pallas import tpu as pltpu


# --------------------------- Pallas kernel: x @ memory^T / T ---------------------------

def _neg_logit_kernel(x_ref, mem_ref, neg_ref, *, inv_T):
    """One grid step: neg tile = (x @ mem_tile^T) * (1/T).

    x_ref   : (B, D)   bf16, resident across the whole grid (same block every step)
    mem_ref : (tk, D)  bf16 tile of the memory bank (streamed from HBM)
    neg_ref : (B, tk)  f32 tile of the logits (lane-dense, tk % 128 == 0)
    """
    neg_ref[...] = (
        jax.lax.dot_general(
            x_ref[...],
            mem_ref[...],
            dimension_numbers=(((1,), (1,)), ((), ())),  # contract lane dim, no transpose
            preferred_element_type=jnp.float32,
        )
        * inv_T
    )


def _pick_queue_tile(n_rows, target):
    """Largest multiple of 128 that divides n_rows and is <= target."""
    assert n_rows % 128 == 0, "memory bank rows must be padded to a multiple of 128"
    tk = max(128, (min(target, n_rows) // 128) * 128)
    while n_rows % tk != 0:
        tk -= 128
    return tk


def compute_full_logits(x, memory, T, tk_target=2048):
    """(x @ memory^T) / T  ->  [B, n_rows] float32, tiled over memory-bank rows."""
    B, D = x.shape
    n_rows, D2 = memory.shape
    assert D == D2
    tk = _pick_queue_tile(n_rows, tk_target)

    x_bf = x.astype(jnp.bfloat16)
    mem = memory.astype(jnp.bfloat16)

    # Double-buffered VMEM need: bank tile + logits tile (+ resident x); clamp to the
    # smallest physical per-TC VMEM (v7x: 64 MiB).
    need = 2 * (tk * D * 2 + B * tk * 4) + B * D * 2
    vmem_limit = int(min(max(2 * need, 32 * 1024 * 1024), 64 * 1024 * 1024))

    kernel = functools.partial(_neg_logit_kernel, inv_T=1.0 / float(T))
    return pl.pallas_call(
        kernel,
        out_shape=jax.ShapeDtypeStruct((B, n_rows), jnp.float32),
        grid_spec=pltpu.PrefetchScalarGridSpec(
            num_scalar_prefetch=0,
            grid=(n_rows // tk,),
            in_specs=[
                pl.BlockSpec((B, D), lambda j: (0, 0)),   # x: resident (same block each step)
                pl.BlockSpec((tk, D), lambda j: (j, 0)),  # bank tile: streamed
            ],
            out_specs=pl.BlockSpec((B, tk), lambda j: (0, j)),
        ),
        compiler_params=pltpu.CompilerParams(
            # Disjoint output tiles per grid step -> safe to shard across TCs (v7x).
            dimension_semantics=("parallel",),
            vmem_limit_bytes=vmem_limit,
        ),
    )(x_bf, mem)


# ------------------------------ momentum memory update ------------------------------

@functools.partial(jax.jit, donate_argnums=(0,))
def _momentum_update(memory, x, y, m):
    """memory[y] <- normalize(m * memory[y] + (1 - m) * x), in place (donated buffer)."""
    old = memory[y].astype(jnp.float32)
    new = m * old + (1.0 - m) * x.astype(jnp.float32)
    new = new / jnp.linalg.norm(new, axis=1, keepdims=True)
    return memory.at[y].set(new.astype(memory.dtype))


# -------------------------------------- module --------------------------------------

class CMCMem:
    """JAX/Pallas port of PyContrast's CMCMem (functional state held on self)."""

    def __init__(self, n_dim, n_data, K=65536, T=0.07, m=0.5, seed=1234, tk=2048):
        self.K = int(K)
        self.T = float(T)
        self.m = float(m)
        self.tk = int(tk)
        self.n_data = int(n_data)
        self._rng = jax.random.PRNGKey(seed)
        k1, k2, self._rng = jax.random.split(self._rng, 3)

        n_rows = ((n_data + 127) // 128) * 128  # pad so BlockSpecs are (8,128)-legal

        def _init_bank(k):
            bank = jax.random.normal(k, (n_data, n_dim), dtype=jnp.float32)
            bank = bank / jnp.linalg.norm(bank, axis=1, keepdims=True)   # F.normalize
            if n_rows != n_data:
                pad = jnp.zeros((n_rows - n_data, n_dim), jnp.float32)
                bank = jnp.concatenate([bank, pad], axis=0)
            return bank.astype(jnp.bfloat16)  # bf16 storage halves the HBM stream

        self.memory_1 = _init_bank(k1)
        self.memory_2 = _init_bank(k2)
        self.last_idx = None  # sampled index matrix of the most recent forward (for tests)
        # TODO(synk): AliasMethod with *non-uniform* probs is not implemented; this module
        # always builds it from torch.ones(n_data), which is exactly uniform sampling.

    def __call__(self, x1, x2, y, x1_jig=None, x2_jig=None,
                 all_x1=None, all_x2=None, all_y=None):
        bsz = x1.shape[0]
        mem1, mem2 = self.memory_1, self.memory_2

        # idx = multinomial.draw(bsz*(K+1)).view(bsz, K+1); idx[:,0] = y
        self._rng, kidx = jax.random.split(self._rng)
        idx = jax.random.randint(kidx, (bsz, self.K + 1), 0, self.n_data, dtype=jnp.int32)
        idx = idx.at[:, 0].set(y.astype(jnp.int32))
        self.last_idx = idx

        has_jig = x1_jig is not None and x2_jig is not None
        if has_jig:
            # Fuse jig queries with the main queries: one stream of each memory bank
            # serves both, halving bank HBM reads and doubling MXU rows.
            xa = jnp.concatenate([x1, x1_jig], axis=0)
            xb = jnp.concatenate([x2, x2_jig], axis=0)
            full_a = compute_full_logits(xa, mem2, self.T, self.tk)   # [2B, n_rows]
            full_b = compute_full_logits(xb, mem1, self.T, self.tk)
            logits1 = jnp.take_along_axis(full_a[:bsz], idx, axis=1)
            logits1_jig = jnp.take_along_axis(full_a[bsz:], idx, axis=1)
            logits2 = jnp.take_along_axis(full_b[:bsz], idx, axis=1)
            logits2_jig = jnp.take_along_axis(full_b[bsz:], idx, axis=1)
        else:
            full1 = compute_full_logits(x1, mem2, self.T, self.tk)
            full2 = compute_full_logits(x2, mem1, self.T, self.tk)
            logits1 = jnp.take_along_axis(full1, idx, axis=1)
            logits2 = jnp.take_along_axis(full2, idx, axis=1)

        labels = jnp.zeros((bsz,), dtype=jnp.int32)

        upd_x1 = all_x1 if all_x1 is not None else x1
        upd_x2 = all_x2 if all_x2 is not None else x2
        upd_y = all_y if all_y is not None else y
        mval = jnp.float32(self.m)
        # donated buffers -> in-place row scatter, no full-bank copy
        self.memory_1 = _momentum_update(self.memory_1, upd_x1, upd_y, mval)
        self.memory_2 = _momentum_update(self.memory_2, upd_x2, upd_y, mval)

        if has_jig:
            return logits1, logits2, logits1_jig, logits2_jig, labels
        return logits1, logits2, labels


# ------------------------- pure-JAX references (for tests) -------------------------

def _reference_logits(x, memory_bf16, idx, T):
    full = jax.lax.dot_general(
        x.astype(jnp.bfloat16), memory_bf16,
        dimension_numbers=(((1,), (1,)), ((), ())),
        preferred_element_type=jnp.float32,
    ) / T
    return jnp.take_along_axis(full, idx, axis=1)


def _reference_update(memory_bf16, x, y, m):
    mem = memory_bf16.astype(jnp.float32)
    new = m * mem[y] + (1.0 - m) * x
    new = new / jnp.linalg.norm(new, axis=1, keepdims=True)
    return mem.at[y].set(new)


if __name__ == "__main__":
    # Small shapes consistent with the module's forward: feats [B, n_dim], memory banks
    # [n_data, n_dim], logits [B, K + 1].  n_data is NOT a multiple of 128 on purpose to
    # exercise the bank-padding path.
    B, n_dim, n_data, K, T, m = 4, 32, 600, 512, 0.07, 0.5

    key = jax.random.PRNGKey(0)
    kx1, kx2, kj1, kj2, ky = jax.random.split(key, 5)

    def _feat(k):
        f = jax.random.normal(k, (B, n_dim), dtype=jnp.float32)
        return f / jnp.linalg.norm(f, axis=1, keepdims=True)

    x1, x2 = _feat(kx1), _feat(kx2)
    x1_jig, x2_jig = _feat(kj1), _feat(kj2)
    y = jax.random.permutation(ky, n_data)[:B].astype(jnp.int32)  # unique indices

    model = CMCMem(n_dim, n_data, K=K, T=T, m=m)
    mem1_before = jnp.copy(model.memory_1)   # bf16 snapshots (pre-update)
    mem2_before = jnp.copy(model.memory_2)

    out = model(x1, x2, y, x1_jig=x1_jig, x2_jig=x2_jig)
    logits1, logits2, logits1_jig, logits2_jig, labels = out
    idx = model.last_idx
    jax.block_until_ready((out, idx, model.memory_1, model.memory_2))

    # --- shape / label contract ---
    assert logits1.shape == (B, K + 1) and logits2.shape == (B, K + 1)
    assert logits1_jig.shape == (B, K + 1) and logits2_jig.shape == (B, K + 1)
    assert labels.shape == (B,) and int(labels.sum()) == 0

    # --- correctness vs. pure-JAX reference of the hot path (same sampled idx) ---
    ref1 = _reference_logits(x1, mem2_before, idx, T)
    ref2 = _reference_logits(x2, mem1_before, idx, T)
    ref1j = _reference_logits(x1_jig, mem2_before, idx, T)
    ref2j = _reference_logits(x2_jig, mem1_before, idx, T)
    assert jnp.allclose(logits1, ref1, atol=1e-2, rtol=1e-2)
    assert jnp.allclose(logits2, ref2, atol=1e-2, rtol=1e-2)
    assert jnp.allclose(logits1_jig, ref1j, atol=1e-2, rtol=1e-2)
    assert jnp.allclose(logits2_jig, ref2j, atol=1e-2, rtol=1e-2)

    # Column 0 is the positive logit x . memory[y] / T.
    pos_ref = jnp.sum(x1.astype(jnp.bfloat16).astype(jnp.float32)
                      * mem2_before[y].astype(jnp.float32), axis=-1) / T
    assert jnp.allclose(logits1[:, 0], pos_ref, atol=1e-2, rtol=1e-2)

    # --- momentum memory update: memory[y] <- normalize(m*memory[y] + (1-m)*x) ---
    exp_mem1 = _reference_update(mem1_before, x1, y, m)
    exp_mem2 = _reference_update(mem2_before, x2, y, m)
    assert jnp.allclose(model.memory_1.astype(jnp.float32), exp_mem1, atol=1e-2)
    assert jnp.allclose(model.memory_2.astype(jnp.float32), exp_mem2, atol=1e-2)

    # --- exercise the no-jig path (3-tuple return) on the updated banks ---
    l1, l2, lab = model(x1, x2, y)
    jax.block_until_ready((l1, l2, lab))
    assert l1.shape == (B, K + 1) and l2.shape == (B, K + 1)
    assert lab.shape == (B,)

    print("KERNEL_OK")
</pallas_src>

<mosaic_0001>
module attributes {stable_mosaic.version = 11 : i64} {
  func.func @_neg_logit_kernel(%arg0: i32, %arg1: memref<8x32xbf16, #tpu.memory_space<vmem>>, %arg2: memref<640x32xbf16, #tpu.memory_space<vmem>>, %arg3: memref<8x640xf32, #tpu.memory_space<vmem>>) attributes {dimension_semantics = [#tpu.dimension_semantics<parallel>], iteration_bounds = array<i64: 1>, scalar_prefetch = 0 : i64, scratch_operands = 0 : i64, tpu.core_type = #tpu.core_type<tc>, window_params = [{pipeline_mode = #tpu.pipeline_mode<synchronous>, transform_indices = @transform_0, window_bounds = array<i64: 8, 32>}, {transform_indices = @transform_1, window_bounds = array<i64: 640, 32>}, {transform_indices = @transform_2, window_bounds = array<i64: 8, 640>}]} {
    %c0 = arith.constant 0 : index
    %c0_0 = arith.constant 0 : index
    %0 = vector.load %arg1[%c0, %c0_0] : memref<8x32xbf16, #tpu.memory_space<vmem>>, vector<8x32xbf16>
    %c0_1 = arith.constant 0 : index
    %c0_2 = arith.constant 0 : index
    %1 = vector.load %arg2[%c0_1, %c0_2] : memref<640x32xbf16, #tpu.memory_space<vmem>>, vector<640x32xbf16>
    %cst = arith.constant dense<0.000000e+00> : vector<8x640xf32>
    %2 = tpu.matmul %0, %1, %cst {dimension_numbers = #tpu.dot_dimension_numbers<[1], [1], [0], [0], [0, 0, 1, 0], [], []>} : vector<8x32xbf16>, vector<640x32xbf16>, vector<8x640xf32> -> vector<8x640xf32>
    %cst_3 = arith.constant 14.2857141 : f32
    %3 = vector.broadcast %cst_3 : f32 to vector<8x640xf32>
    %4 = arith.mulf %2, %3 : vector<8x640xf32>
    %c0_4 = arith.constant 0 : index
    %c0_5 = arith.constant 0 : index
    %5 = vector.load %arg3[%c0_4, %c0_5] : memref<8x640xf32, #tpu.memory_space<vmem>>, vector<8x640xf32>
    tpu.vector_store %arg3[%c0_4, %c0_5], %4 {strides = array<i32>} : memref<8x640xf32, #tpu.memory_space<vmem>>, vector<8x640xf32>,
    return
  }
  func.func @transform_0(%arg0: i32) -> (i32, i32) {
    %c0_i32 = arith.constant 0 : i32
    %c0_i32_0 = arith.constant 0 : i32
    %c0_i32_1 = arith.constant 0 : i32
    return %c0_i32, %c0_i32_0 : i32, i32
  }
  func.func @transform_1(%arg0: i32) -> (i32, i32) {
    %c0_i32 = arith.constant 0 : i32
    %c0_i32_0 = arith.constant 0 : i32
    return %arg0, %c0_i32 : i32, i32
  }
  func.func @transform_2(%arg0: i32) -> (i32, i32) {
    %c0_i32 = arith.constant 0 : i32
    %c0_i32_0 = arith.constant 0 : i32
    return %c0_i32, %arg0 : i32, i32
  }
}

</mosaic_0001>

<llo_original>
// kernel: tpu_custom_call.1
$region0: #{tpu_custom_call.1}
  #allocation0 [shape = 'u32[]', space=smem, size = 0x4, offset = 0x4, fixed_abs, tag = 'smem constant byte address 0x4 - core index']
  #allocation1 [shape = 'u32[144,128]{1,0:T(1,128)}', space=vmem, size = 0x12000, scoped, tag = 'internal scratch']
  %s0 = inlined_call_operand.vmem [shape: bf16[8,32], index: 0, kind: input, shape index: {}]
  %s1 = inlined_call_operand.vmem [shape: bf16[640,32], index: 1, kind: input, shape index: {}]
  %s2 = inlined_call_operand.hbm [shape: f32[8,640], index: 2, kind: output, shape index: {}]
  %s3 = sld [smem:[#allocation0]]
  $region18: #{tpu_custom_call.1} parent=0
    _
  %s5 = ssub.s32 1, %s3
  %s6 = scalar_select 0, %s5, %s3
  $region1: #{tpu_custom_call.1} parent=0
    #allocation2 [shape = 'u8[20480]{0}', space=vmem, size = 0x5000, scoped, tag = 'output window, operand 0, single buffered']
    #allocation3 [shape = 's32[1]{0}', space=sflag, size = 0x4, scoped, tag = 'scoped memory for tpu_custom_call.1']
    %7 = vsyncpa [#allocation3], 0
    // Predicated region
    $region2: #{tpu_custom_call.1} parent=1 // pred_check
      _
    $region3: #{tpu_custom_call.1} parent=1 // pred_check_branch
      %9 = sbr.rel (0) target = $region5
    $region4: #{tpu_custom_call.1} parent=1 // pred_region
      _
    $region5: #{tpu_custom_call.1} parent=1 // pred_fallthru
      _
    // Predicated region
    $region6: #{tpu_custom_call.1} parent=1 // pred_check
      _
    $region7: #{tpu_custom_call.1} parent=1 // pred_check_branch
      %11 = sbr.rel (0) target = $region9
    $region8: #{tpu_custom_call.1} parent=1 // pred_region
      _
    $region9: #{tpu_custom_call.1} parent=1 // pred_fallthru
      _
    %v13 = vld [vmem:[%s0] sm:$0xf]
    %v14 = vld [vmem:[%s1] sm:$0xf]
    %v15 = vld [vmem:[%s1 + $0x4] sm:$0xf]
    %v16 = vld [vmem:[%s1 + $0x8] sm:$0xf]
    %v17 = vld [vmem:[%s1 + $0xc] sm:$0xf]
    %v18 = vld [vmem:[%s1 + $0x10] sm:$0xf]
    %v19 = vld [vmem:[%s1 + $0x14] sm:$0xf]
    %v20 = vld [vmem:[%s1 + $0x18] sm:$0xf]
    %v21 = vld [vmem:[%s1 + $0x1c] sm:$0xf]
    %v22 = vld [vmem:[%s1 + $0x20] sm:$0xf]
    %v23 = vld [vmem:[%s1 + $0x24] sm:$0xf]
    %v24 = vld [vmem:[%s1 + $0x28] sm:$0xf]
    %v25 = vld [vmem:[%s1 + $0x2c] sm:$0xf]
    %v26 = vld [vmem:[%s1 + $0x30] sm:$0xf]
    %v27 = vld [vmem:[%s1 + $0x34] sm:$0xf]
    %v28 = vld [vmem:[%s1 + $0x38] sm:$0xf]
    %v29 = vld [vmem:[%s1 + $0x3c] sm:$0xf]
    %v30 = vld [vmem:[%s1 + $0x40] sm:$0xf]
    %v31 = vld [vmem:[%s1 + $0x44] sm:$0xf]
    %v32 = vld [vmem:[%s1 + $0x48] sm:$0xf]
    %v33 = vld [vmem:[%s1 + $0x4c] sm:$0xf]
    %v34 = vld [vmem:[%s1 + $0x50] sm:$0xf]
    %v35 = vld [vmem:[%s1 + $0x54] sm:$0xf]
    %v36 = vld [vmem:[%s1 + $0x58] sm:$0xf]
    %v37 = vld [vmem:[%s1 + $0x5c] sm:$0xf]
    %v38 = vld [vmem:[%s1 + $0x60] sm:$0xf]
    %v39 = vld [vmem:[%s1 + $0x64] sm:$0xf]
    %v40 = vld [vmem:[%s1 + $0x68] sm:$0xf]
    %v41 = vld [vmem:[%s1 + $0x6c] sm:$0xf]
    %v42 = vld [vmem:[%s1 + $0x70] sm:$0xf]
    %v43 = vld [vmem:[%s1 + $0x74] sm:$0xf]
    %v44 = vld [vmem:[%s1 + $0x78] sm:$0xf]
    %v45 = vld [vmem:[%s1 + $0x7c] sm:$0xf]
    %v46 = vld [vmem:[%s1 + $0x80] sm:$0xf]
    %v47 = vld [vmem:[%s1 + $0x84] sm:$0xf]
    %v48 = vld [vmem:[%s1 + $0x88] sm:$0xf]
    %v49 = vld [vmem:[%s1 + $0x8c] sm:$0xf]
    %v50 = vld [vmem:[%s1 + $0x90] sm:$0xf]
    %v51 = vld [vmem:[%s1 + $0x94] sm:$0xf]
    %v52 = vld [vmem:[%s1 + $0x98] sm:$0xf]
    %v53 = vld [vmem:[%s1 + $0x9c] sm:$0xf]
    %v54 = vld [vmem:[%s1 + $0xa0] sm:$0xf]
    %v55 = vld [vmem:[%s1 + $0xa4] sm:$0xf]
    %v56 = vld [vmem:[%s1 + $0xa8] sm:$0xf]
    %v57 = vld [vmem:[%s1 + $0xac] sm:$0xf]
    %v58 = vld [vmem:[%s1 + $0xb0] sm:$0xf]
    %v59 = vld [vmem:[%s1 + $0xb4] sm:$0xf]
    %v60 = vld [vmem:[%s1 + $0xb8] sm:$0xf]
    %v61 = vld [vmem:[%s1 + $0xbc] sm:$0xf]
    %v62 = vld [vmem:[%s1 + $0xc0] sm:$0xf]
    %v63 = vld [vmem:[%s1 + $0xc4] sm:$0xf]
    %v64 = vld [vmem:[%s1 + $0xc8] sm:$0xf]
    %v65 = vld [vmem:[%s1 + $0xcc] sm:$0xf]
    %v66 = vld [vmem:[%s1 + $0xd0] sm:$0xf]
    %v67 = vld [vmem:[%s1 + $0xd4] sm:$0xf]
    %v68 = vld [vmem:[%s1 + $0xd8] sm:$0xf]
    %v69 = vld [vmem:[%s1 + $0xdc] sm:$0xf]
    %v70 = vld [vmem:[%s1 + $0xe0] sm:$0xf]
    %v71 = vld [vmem:[%s1 + $0xe4] sm:$0xf]
    %v72 = vld [vmem:[%s1 + $0xe8] sm:$0xf]
    %v73 = vld [vmem:[%s1 + $0xec] sm:$0xf]
    %v74 = vld [vmem:[%s1 + $0xf0] sm:$0xf]
    %v75 = vld [vmem:[%s1 + $0xf4] sm:$0xf]
    %v76 = vld [vmem:[%s1 + $0xf8] sm:$0xf]
    %v77 = vld [vmem:[%s1 + $0xfc] sm:$0xf]
    %v78 = vld [vmem:[%s1 + $0x100] sm:$0xf]
    %v79 = vld [vmem:[%s1 + $0x104] sm:$0xf]
    %v80 = vld [vmem:[%s1 + $0x108] sm:$0xf]
    %v81 = vld [vmem:[%s1 + $0x10c] sm:$0xf]
    %v82 = vld [vmem:[%s1 + $0x110] sm:$0xf]
    %v83 = vld [vmem:[%s1 + $0x114] sm:$0xf]
    %v84 = vld [vmem:[%s1 + $0x118] sm:$0xf]
    %v85 = vld [vmem:[%s1 + $0x11c] sm:$0xf]
    %v86 = vld [vmem:[%s1 + $0x120] sm:$0xf]
    %v87 = vld [vmem:[%s1 + $0x124] sm:$0xf]
    %v88 = vld [vmem:[%s1 + $0x128] sm:$0xf]
    %v89 = vld [vmem:[%s1 + $0x12c] sm:$0xf]
    %v90 = vld [vmem:[%s1 + $0x130] sm:$0xf]
    %v91 = vld [vmem:[%s1 + $0x134] sm:$0xf]
    %v92 = vld [vmem:[%s1 + $0x138] sm:$0xf]
    %v93 = vld [vmem:[%s1 + $0x13c] sm:$0xf]
    %v174 = vunpack.c.l.b16 %v14
    %v175 = vunpack.c.l.b16 %v15
    %v176 = vunpack.c.l.b16 %v16
    %v177 = vunpack.c.l.b16 %v17
    %v178 = vunpack.c.l.b16 %v18
    %v179 = vunpack.c.l.b16 %v19
    %v180 = vunpack.c.l.b16 %v20
    %v181 = vunpack.c.l.b16 %v21
    %v182 = vunpack.c.l.b16 %v22
    %v183 = vunpack.c.l.b16 %v23
    %v184 = vunpack.c.l.b16 %v24
    %v185 = vunpack.c.l.b16 %v25
    %v186 = vunpack.c.l.b16 %v26
    %v187 = vunpack.c.l.b16 %v27
    %v188 = vunpack.c.l.b16 %v28
    %v189 = vunpack.c.l.b16 %v29
    %v190 = vunpack.c.l.b16 %v30
    %v191 = vunpack.c.l.b16 %v31
    %v192 = vunpack.c.l.b16 %v32
    %v193 = vunpack.c.l.b16 %v33
    %v194 = vunpack.c.l.b16 %v34
    %v195 = vunpack.c.l.b16 %v35
    %v196 = vunpack.c.l.b16 %v36
    %v197 = vunpack.c.l.b16 %v37
    %v198 = vunpack.c.l.b16 %v38
    %v199 = vunpack.c.l.b16 %v39
    %v200 = vunpack.c.l.b16 %v40
    %v201 = vunpack.c.l.b16 %v41
    %v202 = vunpack.c.l.b16 %v42
    %v203 = vunpack.c.l.b16 %v43
    %v204 = vunpack.c.l.b16 %v44
    %v205 = vunpack.c.l.b16 %v45
    %v206 = vunpack.c.l.b16 %v46
    %v207 = vunpack.c.l.b16 %v47
    %v208 = vunpack.c.l.b16 %v48
    %v209 = vunpack.c.l.b16 %v49
    %v210 = vunpack.c.l.b16 %v50
    %v211 = vunpack.c.l.b16 %v51
    %v212 = vunpack.c.l.b16 %v52
    %v213 = vunpack.c.l.b16 %v53
    %v214 = vunpack.c.l.b16 %v54
    %v215 = vunpack.c.l.b16 %v55
    %v216 = vunpack.c.l.b16 %v56
    %v217 = vunpack.c.l.b16 %v57
    %v218 = vunpack.c.l.b16 %v58
    %v219 = vunpack.c.l.b16 %v59
    %v220 = vunpack.c.l.b16 %v60
    %v221 = vunpack.c.l.b16 %v61
    %v222 = vunpack.c.l.b16 %v62
    %v223 = vunpack.c.l.b16 %v63
    %v224 = vunpack.c.l.b16 %v64
    %v225 = vunpack.c.l.b16 %v65
    %v226 = vunpack.c.l.b16 %v66
    %v227 = vunpack.c.l.b16 %v67
    %v228 = vunpack.c.l.b16 %v68
    %v229 = vunpack.c.l.b16 %v69
    %v230 = vunpack.c.l.b16 %v70
    %v231 = vunpack.c.l.b16 %v71
    %v232 = vunpack.c.l.b16 %v72
    %v233 = vunpack.c.l.b16 %v73
    %v234 = vunpack.c.l.b16 %v74
    %v235 = vunpack.c.l.b16 %v75
    %v236 = vunpack.c.l.b16 %v76
    %v237 = vunpack.c.l.b16 %v77
    %v238 = vunpack.c.l.b16 %v78
    %v239 = vunpack.c.l.b16 %v79
    %v240 = vunpack.c.l.b16 %v80
    %v241 = vunpack.c.l.b16 %v81
    %v242 = vunpack.c.l.b16 %v82
    %v243 = vunpack.c.l.b16 %v83
    %v244 = vunpack.c.l.b16 %v84
    %v245 = vunpack.c.l.b16 %v85
    %v246 = vunpack.c.l.b16 %v86
    %v247 = vunpack.c.l.b16 %v87
    %v248 = vunpack.c.l.b16 %v88
    %v249 = vunpack.c.l.b16 %v89
    %v250 = vunpack.c.l.b16 %v90
    %v251 = vunpack.c.l.b16 %v91
    %v252 = vunpack.c.l.b16 %v92
    %v253 = vunpack.c.l.b16 %v93
    %v254 = vpack.c.b16 %v175, %v174
    %v255 = vpack.c.b16 %v177, %v176
    %v256 = vpack.c.b16 %v179, %v178
    %v257 = vpack.c.b16 %v181, %v180
    %v258 = vpack.c.b16 %v183, %v182
    %v259 = vpack.c.b16 %v185, %v184
    %v260 = vpack.c.b16 %v187, %v186
    %v261 = vpack.c.b16 %v189, %v188
    %v262 = vpack.c.b16 %v191, %v190
    %v263 = vpack.c.b16 %v193, %v192
    %v264 = vpack.c.b16 %v195, %v194
    %v265 = vpack.c.b16 %v197, %v196
    %v266 = vpack.c.b16 %v199, %v198
    %v267 = vpack.c.b16 %v201, %v200
    %v268 = vpack.c.b16 %v203, %v202
    %v269 = vpack.c.b16 %v205, %v204
    %v270 = vpack.c.b16 %v207, %v206
    %v271 = vpack.c.b16 %v209, %v208
    %v272 = vpack.c.b16 %v211, %v210
    %v273 = vpack.c.b16 %v213, %v212
    %v274 = vpack.c.b16 %v215, %v214
    %v275 = vpack.c.b16 %v217, %v216
    %v276 = vpack.c.b16 %v219, %v218
    %v277 = vpack.c.b16 %v221, %v220
    %v278 = vpack.c.b16 %v223, %v222
    %v279 = vpack.c.b16 %v225, %v224
    %v280 = vpack.c.b16 %v227, %v226
    %v281 = vpack.c.b16 %v229, %v228
    %v282 = vpack.c.b16 %v231, %v230
    %v283 = vpack.c.b16 %v233, %v232
    %v284 = vpack.c.b16 %v235, %v234
    %v285 = vpack.c.b16 %v237, %v236
    %v286 = vpack.c.b16 %v239, %v238
    %v287 = vpack.c.b16 %v241, %v240
    %v288 = vpack.c.b16 %v243, %v242
    %v289 = vpack.c.b16 %v245, %v244
    %v290 = vpack.c.b16 %v247, %v246
    %v291 = vpack.c.b16 %v249, %v248
    %v292 = vpack.c.b16 %v251, %v250
    %v293 = vpack.c.b16 %v253, %v252
    %vm294 = vcmask 261120
    %v296 = vsel %vm294, %v13, 0
    %v299 = vsel %vm294, %v254, 0
    %v302 = vsel %vm294, %v255, 0
    %v305 = vsel %vm294, %v256, 0
    %v308 = vsel %vm294, %v257, 0
    %v311 = vsel %vm294, %v258, 0
    %v314 = vsel %vm294, %v259, 0
    %v317 = vsel %vm294, %v260, 0
    %v320 = vsel %vm294, %v261, 0
    %v323 = vsel %vm294, %v262, 0
    %v326 = vsel %vm294, %v263, 0
    %v329 = vsel %vm294, %v264, 0
    %v332 = vsel %vm294, %v265, 0
    %v335 = vsel %vm294, %v266, 0
    %v338 = vsel %vm294, %v267, 0
    %v341 = vsel %vm294, %v268, 0
    %v344 = vsel %vm294, %v269, 0
    %v347 = vsel %vm294, %v270, 0
    %v350 = vsel %vm294, %v271, 0
    %v353 = vsel %vm294, %v272, 0
    %v356 = vsel %vm294, %v273, 0
    %v359 = vsel %vm294, %v274, 0
    %v362 = vsel %vm294, %v275, 0
    %v365 = vsel %vm294, %v276, 0
    %v368 = vsel %vm294, %v277, 0
    %v371 = vsel %vm294, %v278, 0
    %v374 = vsel %vm294, %v279, 0
    %v377 = vsel %vm294, %v280, 0
    %v380 = vsel %vm294, %v281, 0
    %v383 = vsel %vm294, %v282, 0
    %v386 = vsel %vm294, %v283, 0
    %v389 = vsel %vm294, %v284, 0
    %v392 = vsel %vm294, %v285, 0
    %v395 = vsel %vm294, %v286, 0
    %v398 = vsel %vm294, %v287, 0
    %v401 = vsel %vm294, %v288, 0
    %v404 = vsel %vm294, %v289, 0
    %v407 = vsel %vm294, %v290, 0
    %v410 = vsel %vm294, %v291, 0
    %v413 = vsel %vm294, %v292, 0
    %v416 = vsel %vm294, %v293, 0
    %418 = vmatprep.subr.bf16.mxu0 0
    %419 = vmatpush1.bf16.xpose.msra.mxu0 %v299
    %420 = vmatprep.subr.bf16.mxu0 0
    %421 = vmatpush1.bf16.xpose.msra.mxu0 %v302
    %422 = vmatprep.subr.bf16.mxu0 0
    %423 = vmatpush1.bf16.xpose.msra.mxu0 %v305
    %424 = vmatprep.subr.bf16.mxu0 0
    %425 = vmatpush1.bf16.xpose.msra.mxu0 %v308
    %426 = vmatprep.subr.bf16.mxu0 0
    %427 = vmatpush1.bf16.xpose.msra.mxu0 %v311
    %428 = vmatprep.subr.bf16.mxu0 0
    %429 = vmatpush1.bf16.xpose.msra.mxu0 %v314
    %430 = vmatprep.subr.bf16.mxu0 0
    %431 = vmatpush1.bf16.xpose.msra.mxu0 %v317
    %432 = vmatprep.subr.bf16.mxu0 0
    %433 = vmatpush1.bf16.xpose.msra.mxu0 %v320
    %434 = vmatprep.subr.bf16.mxu0 0
    %435 = vmatpush1.bf16.xpose.msra.mxu0 %v323
    %436 = vmatprep.subr.bf16.mxu0 0
    %437 = vmatpush1.bf16.xpose.msra.mxu0 %v326
    %438 = vmatprep.subr.bf16.mxu0 0
    %439 = vmatpush1.bf16.xpose.msra.mxu0 %v329
    %440 = vmatprep.subr.bf16.mxu0 0
    %441 = vmatpush1.bf16.xpose.msra.mxu0 %v332
    %442 = vmatprep.subr.bf16.mxu0 0
    %443 = vmatpush1.bf16.xpose.msra.mxu0 %v335
    %444 = vmatprep.subr.bf16.mxu0 0
    %445 = vmatpush1.bf16.xpose.msra.mxu0 %v338
    %446 = vmatprep.subr.bf16.mxu0 0
    %447 = vmatpush1.bf16.xpose.msra.mxu0 %v341
    %448 = vmatprep.subr.bf16.mxu0 0
    %449 = vmatpush1.bf16.xpose.msra.mxu0 %v344
    %450 = vmatprep.mubr.bf16.mxu0 0
    %451 = vmatmul.mubr.bf16.gmra.mrb[0].mxu0 %v296
    %v452 = vpop.f32.mrb[0].mxu0
    %v453 = vadd.f32 0.0, %v452
    %v454 = vpop.f32.mrb[0].mxu0
    %v455 = vadd.f32 0.0, %v454
    %v456 = vpop.f32.mrb[0].mxu0
    %v457 = vpop.f32.mrb[0].mxu0
    %458 = vdwg.mxu0
    %459 = vmatprep.subr.bf16.mxu0 0
    %460 = vmatpush1.bf16.xpose.msra.mxu0 %v347
    %461 = vmatprep.subr.bf16.mxu0 0
    %462 = vmatpush1.bf16.xpose.msra.mxu0 %v350
    %463 = vmatprep.subr.bf16.mxu0 0
    %464 = vmatpush1.bf16.xpose.msra.mxu0 %v353
    %465 = vmatprep.subr.bf16.mxu0 0
    %466 = vmatpush1.bf16.xpose.msra.mxu0 %v356
    %467 = vmatprep.subr.bf16.mxu0 0
    %468 = vmatpush1.bf16.xpose.msra.mxu0 %v359
    %469 = vmatprep.subr.bf16.mxu0 0
    %470 = vmatpush1.bf16.xpose.msra.mxu0 %v362
    %471 = vmatprep.subr.bf16.mxu0 0
    %472 = vmatpush1.bf16.xpose.msra.mxu0 %v365
    %473 = vmatprep.subr.bf16.mxu0 0
    %474 = vmatpush1.bf16.xpose.msra.mxu0 %v368
    %475 = vmatprep.subr.bf16.mxu0 0
    %476 = vmatpush1.bf16.xpose.msra.mxu0 %v371
    %477 = vmatprep.subr.bf16.mxu0 0
    %478 = vmatpush1.bf16.xpose.msra.mxu0 %v374
    %479 = vmatprep.subr.bf16.mxu0 0
    %480 = vmatpush1.bf16.xpose.msra.mxu0 %v377
    %481 = vmatprep.subr.bf16.mxu0 0
    %482 = vmatpush1.bf16.xpose.msra.mxu0 %v380
    %483 = vmatprep.subr.bf16.mxu0 0
    %484 = vmatpush1.bf16.xpose.msra.mxu0 %v383
    %485 = vmatprep.subr.bf16.mxu0 0
    %486 = vmatpush1.bf16.xpose.msra.mxu0 %v386
    %487 = vmatprep.subr.bf16.mxu0 0
    %488 = vmatpush1.bf16.xpose.msra.mxu0 %v389
    %489 = vmatprep.subr.bf16.mxu0 0
    %490 = vmatpush1.bf16.xpose.msra.mxu0 %v392
    %491 = vmatprep.mubr.bf16.mxu0 0
    %492 = vmatmul.mubr.bf16.gmra.mrb[0].mxu0 %v296
    %v493 = vpop.f32.mrb[0].mxu0
    %v494 = vadd.f32 0.0, %v493
    %v495 = vpop.f32.mrb[0].mxu0
    %v496 = vadd.f32 0.0, %v495
    %v497 = vpop.f32.mrb[0].mxu0
    %v498 = vpop.f32.mrb[0].mxu0
    %499 = vdwg.mxu0
    %500 = vmatprep.subr.bf16.mxu0 0
    %501 = vmatpush1.bf16.xpose.msra.mxu0 %v395
    %502 = vmatprep.subr.bf16.mxu0 0
    %503 = vmatpush1.bf16.xpose.msra.mxu0 %v398
    %504 = vmatprep.subr.bf16.mxu0 0
    %505 = vmatpush1.bf16.xpose.msra.mxu0 %v401
    %506 = vmatprep.subr.bf16.mxu0 0
    %507 = vmatpush1.bf16.xpose.msra.mxu0 %v404
    %508 = vmatprep.subr.bf16.mxu0 0
    %509 = vmatpush1.bf16.xpose.msra.mxu0 %v407
    %510 = vmatprep.subr.bf16.mxu0 0
    %511 = vmatpush1.bf16.xpose.msra.mxu0 %v410
    %512 = vmatprep.subr.bf16.mxu0 0
    %513 = vmatpush1.bf16.xpose.msra.mxu0 %v413
    %514 = vmatprep.subr.bf16.mxu0 0
    %515 = vmatpush1.bf16.xpose.msra.mxu0 %v416
    %516 = vmatprep.subr.bf16.mxu0 0
    %517 = vmatpush1.bf16.xpose.msra.mxu0 0
    %518 = vmatprep.subr.bf16.mxu0 0
    %519 = vmatpush1.bf16.xpose.msra.mxu0 0
    %520 = vmatprep.subr.bf16.mxu0 0
    %521 = vmatpush1.bf16.xpose.msra.mxu0 0
    %522 = vmatprep.subr.bf16.mxu0 0
    %523 = vmatpush1.bf16.xpose.msra.mxu0 0
    %524 = vmatprep.subr.bf16.mxu0 0
    %525 = vmatpush1.bf16.xpose.msra.mxu0 0
    %526 = vmatprep.subr.bf16.mxu0 0
    %527 = vmatpush1.bf16.xpose.msra.mxu0 0
    %528 = vmatprep.subr.bf16.mxu0 0
    %529 = vmatpush1.bf16.xpose.msra.mxu0 0
    %530 = vmatprep.subr.bf16.mxu0 0
    %531 = vmatpush1.bf16.xpose.msra.mxu0 0
    %532 = vmatprep.mubr.bf16.mxu0 0
    %533 = vmatmul.mubr.bf16.gmra.mrb[0].mxu0 %v296
    %v534 = vpop.f32.mrb[0].mxu0
    %v535 = vadd.f32 0.0, %v534
    %v536 = vpop.f32.mrb[0].mxu0
    %v537 = vpop.f32.mrb[0].mxu0
    %v538 = vpop.f32.mrb[0].mxu0
    %539 = vdwg.mxu0
    %v540 = vmul.f32 %v453, 14.285714
    %v541 = vmul.f32 %v455, 14.285714
    %v542 = vmul.f32 %v494, 14.285714
    %v543 = vmul.f32 %v496, 14.285714
    %v544 = vmul.f32 %v535, 14.285714
    %545 = vst [vmem:[#allocation2] sm:$0xff] %v540
    %546 = vst [vmem:[#allocation2 + $0x8] sm:$0xff] %v541
    %547 = vst [vmem:[#allocation2 + $0x10] sm:$0xff] %v542
    %548 = vst [vmem:[#allocation2 + $0x18] sm:$0xff] %v543
    %549 = vst [vmem:[#allocation2 + $0x20] sm:$0xff] %v544
    // Predicated region
    $region10: #{tpu_custom_call.1} parent=1 // pred_check
      _
    $region11: #{tpu_custom_call.1} parent=1 // pred_check_branch
      %551 = sbr.rel (0) target = $region13
    $region12: #{tpu_custom_call.1} parent=1 // pred_region
      %s553 = ssub.s32 640, 640
      %554 = vsyncadd [#allocation3], %s553
      %s556 = sshll.u32 [#allocation2], 4
      %s557 = int_to_ptr.vmem [resolvable:$true] %s556
      %559 = dma.vmem_to_hbm [thread:$0]  %s557, 640, %s2, [#allocation3]
    $region13: #{tpu_custom_call.1} parent=1 // pred_fallthru
      _
    // Predicated region
    $region14: #{tpu_custom_call.1} parent=1 // pred_check
      _
    $region15: #{tpu_custom_call.1} parent=1 // pred_check_branch
      %561 = sbr.rel (0) target = $region17
    $region16: #{tpu_custom_call.1} parent=1 // pred_region
      %562 = dma.done [#allocation3], 640
    $region17: #{tpu_custom_call.1} parent=1 // pred_fallthru
      _
    %563 = vsyncpa [#allocation3], 1

</llo_original>
